<compile_context>
chip_gen: v7x
topology: tpu7x:2x2x1
jax: 0.10.0
libtpu: 0.0.40
codegen_flags: <defaults>
</compile_context>

<pallas_src>
import math

import jax
import jax.numpy as jnp
import numpy as np
from jax import lax
from jax.experimental import pallas as pl
from jax.experimental.pallas import tpu as pltpu

# ----------------------- config (small synthetic sizes) -----------------------
B = 2          # batch
T = 8          # sequence length
C = 32         # n_embd
N_HEAD = 4     # n_head
HEAD_DIM = C // N_HEAD
EPS = 1e-5

assert T & (T - 1) == 0, "shift-based group mask assumes power-of-two T"
T_SHIFT = T.bit_length() - 1

R = B * T               # folded batch*seq rows
RH = N_HEAD * R         # head-folded rows


# ------------------------------- kernel helpers --------------------------------
def _gelu_tanh(x):
    # nn.GELU(approximate='tanh')
    c = math.sqrt(2.0 / math.pi)
    return 0.5 * x * (1.0 + jnp.tanh(c * (x + 0.044715 * x * x * x)))


def _layernorm(x, w, b):
    mu = jnp.mean(x, axis=-1, keepdims=True)
    var = jnp.mean((x - mu) ** 2, axis=-1, keepdims=True)
    return (x - mu) * lax.rsqrt(var + EPS) * w + b


# ------------------------------- Pallas kernel ---------------------------------
def block_kernel(x_ref,
                 ln1_w_ref, ln1_b_ref,
                 w_qkv_ref, b_qkv_ref,
                 w_ao_ref, b_ao_ref,
                 ln2_w_ref, ln2_b_ref,
                 w_fc_ref, b_fc_ref,
                 w_mp_ref, b_mp_ref,
                 o_ref):
    x = x_ref[...]                                          # (R, C) f32

    # ---- x + attn(ln_1(x)) -------------------------------------------------
    h1 = _layernorm(x, ln1_w_ref[...], ln1_b_ref[...])

    # Fused QKV projection: a single (R,C)@(C,3C) MXU push.
    qkv = jnp.dot(h1, w_qkv_ref[...],
                  preferred_element_type=jnp.float32) + b_qkv_ref[...]   # (R, 3C)

    # Fold the head axis into rows: (R, H*D) -> (H*R, D), (h, b, t)-major.
    # Lane slices + sublane concat run on the VPU/XLU slots, not the MXU.
    def fold(off):
        return jnp.concatenate(
            [qkv[:, off + h * HEAD_DIM: off + (h + 1) * HEAD_DIM]
             for h in range(N_HEAD)],
            axis=0)

    qf = fold(0)          # (H*R, D)
    kf = fold(C)
    vf = fold(2 * C)

    # Combined head AND batch AND causal mask over the folded index i = h*R + b*T + t.
    # Because the fold is (h, b, t)-major and the group size is T, "same head & same
    # batch" collapses to "same T-group", so the formula is the same as per batch.
    ri = lax.broadcasted_iota(jnp.int32, (RH, RH), 0)
    ci = lax.broadcasted_iota(jnp.int32, (RH, RH), 1)
    allowed = jnp.logical_and(
        ci <= ri,
        jnp.right_shift(ri, T_SHIFT) == jnp.right_shift(ci, T_SHIFT))
    bias = jnp.where(allowed, jnp.float32(0.0), jnp.float32(-1e30))      # additive, finite

    scale = jnp.float32(1.0 / math.sqrt(HEAD_DIM))

    # One QK^T, one softmax, one PV for all heads/batches.
    s = lax.dot_general(qf, kf, (((1,), (1,)), ((), ())),
                        preferred_element_type=jnp.float32)              # (H*R, H*R)
    s = s * scale + bias
    s = s - jnp.max(s, axis=-1, keepdims=True)
    p = jnp.exp(s)
    p = p / jnp.sum(p, axis=-1, keepdims=True)                           # exact divide
    af = jnp.dot(p, vf, preferred_element_type=jnp.float32)              # (H*R, D)

    # Unfold heads back onto lanes: (H*R, D) -> (R, C), then one output projection.
    y_att = jnp.concatenate([af[h * R:(h + 1) * R, :] for h in range(N_HEAD)],
                            axis=1)                                      # (R, C)
    y = jnp.dot(y_att, w_ao_ref[...],
                preferred_element_type=jnp.float32) + b_ao_ref[...]
    x = x + y

    # ---- x + mlp(ln_2(x)) ----------------------------------------------------
    h2 = _layernorm(x, ln2_w_ref[...], ln2_b_ref[...])
    f = jnp.dot(h2, w_fc_ref[...], preferred_element_type=jnp.float32) + b_fc_ref[...]
    f = _gelu_tanh(f)
    m_out = jnp.dot(f, w_mp_ref[...], preferred_element_type=jnp.float32) + b_mp_ref[...]
    o_ref[...] = x + m_out


# --------------------------------- wrapper --------------------------------------
def gpt2_block(x, params):
    (ln1_w, ln1_b, w_qkv, b_qkv, w_ao, b_ao,
     ln2_w, ln2_b, w_fc, b_fc, w_mp, b_mp) = params

    Bv, Tv, Cv = x.shape
    Rv = Bv * Tv
    x2 = x.reshape(Rv, Cv)                                  # row-major, free reshape

    row2 = lambda a: a.reshape(1, -1)                       # 1-D params -> (1, N)

    vmem = pl.BlockSpec(memory_space=pltpu.MemorySpace.VMEM)

    out2 = pl.pallas_call(
        block_kernel,
        out_shape=jax.ShapeDtypeStruct((Rv, Cv), jnp.float32),
        in_specs=[vmem] * 13,
        out_specs=vmem,
    )(x2,
      row2(ln1_w), row2(ln1_b),
      w_qkv, row2(b_qkv),
      w_ao, row2(b_ao),
      row2(ln2_w), row2(ln2_b),
      w_fc, row2(b_fc),
      w_mp, row2(b_mp))

    return out2.reshape(Bv, Tv, Cv)


# --------------------------- pure-JAX reference ----------------------------------
def gpt2_block_ref(x, params):
    (ln1_w, ln1_b, w_qkv, b_qkv, w_ao, b_ao,
     ln2_w, ln2_b, w_fc, b_fc, w_mp, b_mp) = params

    def ln(v, w, b):
        mu = jnp.mean(v, axis=-1, keepdims=True)
        var = jnp.mean((v - mu) ** 2, axis=-1, keepdims=True)
        return (v - mu) / jnp.sqrt(var + EPS) * w + b

    h1 = ln(x, ln1_w, ln1_b)
    qkv = h1 @ w_qkv + b_qkv
    q, k, v = jnp.split(qkv, 3, axis=-1)
    q = q.reshape(B, T, N_HEAD, HEAD_DIM).transpose(0, 2, 1, 3)
    k = k.reshape(B, T, N_HEAD, HEAD_DIM).transpose(0, 2, 1, 3)
    v = v.reshape(B, T, N_HEAD, HEAD_DIM).transpose(0, 2, 1, 3)
    scores = jnp.einsum('bhqd,bhkd->bhqk', q, k) / math.sqrt(HEAD_DIM)
    mask = jnp.tril(jnp.ones((T, T), dtype=bool))
    scores = jnp.where(mask, scores, -jnp.inf)
    p = jax.nn.softmax(scores, axis=-1)
    att = jnp.einsum('bhqk,bhkd->bhqd', p, v).transpose(0, 2, 1, 3).reshape(B, T, C)
    x = x + att @ w_ao + b_ao
    h2 = ln(x, ln2_w, ln2_b)
    f = h2 @ w_fc + b_fc
    c = math.sqrt(2.0 / math.pi)
    f = 0.5 * f * (1.0 + jnp.tanh(c * (f + 0.044715 * f ** 3)))
    return x + f @ w_mp + b_mp


# ----------------------------------- main ----------------------------------------
if __name__ == "__main__":
    key = jax.random.PRNGKey(0)
    keys = jax.random.split(key, 8)

    x = jax.random.normal(keys[0], (B, T, C), dtype=jnp.float32)

    std = 0.02
    ln1_w = jnp.ones((C,), jnp.float32)
    ln1_b = jnp.zeros((C,), jnp.float32)
    ln2_w = jnp.ones((C,), jnp.float32)
    ln2_b = jnp.zeros((C,), jnp.float32)
    # weights stored as (in, out) — i.e. the transpose of torch nn.Linear.weight
    w_qkv = std * jax.random.normal(keys[1], (C, 3 * C), jnp.float32)
    b_qkv = std * jax.random.normal(keys[2], (3 * C,), jnp.float32)
    w_ao = std * jax.random.normal(keys[3], (C, C), jnp.float32)
    b_ao = std * jax.random.normal(keys[4], (C,), jnp.float32)
    w_fc = std * jax.random.normal(keys[5], (C, 4 * C), jnp.float32)
    b_fc = std * jax.random.normal(keys[6], (4 * C,), jnp.float32)
    w_mp = std * jax.random.normal(keys[7], (4 * C, C), jnp.float32)
    b_mp = jnp.zeros((C,), jnp.float32)

    params = (ln1_w, ln1_b, w_qkv, b_qkv, w_ao, b_ao,
              ln2_w, ln2_b, w_fc, b_fc, w_mp, b_mp)

    out = gpt2_block(x, params)
    out = jax.block_until_ready(out)

    ref = gpt2_block_ref(x, params)
    np.testing.assert_allclose(np.asarray(out), np.asarray(ref),
                               rtol=1e-4, atol=1e-5)
    print("KERNEL_OK")
</pallas_src>

<mosaic_0001>
module attributes {stable_mosaic.version = 11 : i64} {
  func.func @block_kernel(%arg0: memref<16x32xf32, #tpu.memory_space<vmem>>, %arg1: memref<1x32xf32, #tpu.memory_space<vmem>>, %arg2: memref<1x32xf32, #tpu.memory_space<vmem>>, %arg3: memref<32x96xf32, #tpu.memory_space<vmem>>, %arg4: memref<1x96xf32, #tpu.memory_space<vmem>>, %arg5: memref<32x32xf32, #tpu.memory_space<vmem>>, %arg6: memref<1x32xf32, #tpu.memory_space<vmem>>, %arg7: memref<1x32xf32, #tpu.memory_space<vmem>>, %arg8: memref<1x32xf32, #tpu.memory_space<vmem>>, %arg9: memref<32x128xf32, #tpu.memory_space<vmem>>, %arg10: memref<1x128xf32, #tpu.memory_space<vmem>>, %arg11: memref<128x32xf32, #tpu.memory_space<vmem>>, %arg12: memref<1x32xf32, #tpu.memory_space<vmem>>, %arg13: memref<16x32xf32, #tpu.memory_space<vmem>>) attributes {dimension_semantics = [], scalar_prefetch = 0 : i64, scratch_operands = 0 : i64, tpu.core_type = #tpu.core_type<tc>} {
    %c0 = arith.constant 0 : index
    %c0_0 = arith.constant 0 : index
    %0 = vector.load %arg0[%c0, %c0_0] : memref<16x32xf32, #tpu.memory_space<vmem>>, vector<16x32xf32>
    %c0_1 = arith.constant 0 : index
    %c0_2 = arith.constant 0 : index
    %1 = vector.load %arg1[%c0_1, %c0_2] : memref<1x32xf32, #tpu.memory_space<vmem>>, vector<1x32xf32>
    %c0_3 = arith.constant 0 : index
    %c0_4 = arith.constant 0 : index
    %2 = vector.load %arg2[%c0_3, %c0_4] : memref<1x32xf32, #tpu.memory_space<vmem>>, vector<1x32xf32>
    %cst = arith.constant dense<0.000000e+00> : vector<16xf32>
    %3 = vector.multi_reduction <add>, %0, %cst [1] : vector<16x32xf32> to vector<16xf32>
    %4 = vector.shape_cast %3 : vector<16xf32> to vector<16x1xf32>
    %cst_5 = arith.constant 3.200000e+01 : f32
    %5 = vector.broadcast %cst_5 : f32 to vector<16x1xf32>
    %6 = arith.divf %4, %5 : vector<16x1xf32>
    %7 = vector.broadcast %6 : vector<16x1xf32> to vector<16x32xf32>
    %8 = arith.subf %0, %7 : vector<16x32xf32>
    %9 = arith.mulf %8, %8 : vector<16x32xf32>
    %cst_6 = arith.constant dense<0.000000e+00> : vector<16xf32>
    %10 = vector.multi_reduction <add>, %9, %cst_6 [1] : vector<16x32xf32> to vector<16xf32>
    %11 = vector.shape_cast %10 : vector<16xf32> to vector<16x1xf32>
    %cst_7 = arith.constant 3.200000e+01 : f32
    %12 = vector.broadcast %cst_7 : f32 to vector<16x1xf32>
    %13 = arith.divf %11, %12 : vector<16x1xf32>
    %14 = vector.broadcast %6 : vector<16x1xf32> to vector<16x32xf32>
    %15 = arith.subf %0, %14 : vector<16x32xf32>
    %cst_8 = arith.constant 9.99999974E-6 : f32
    %16 = vector.broadcast %cst_8 : f32 to vector<16x1xf32>
    %17 = arith.addf %13, %16 : vector<16x1xf32>
    %18 = math.rsqrt %17 : vector<16x1xf32>
    %19 = vector.broadcast %18 : vector<16x1xf32> to vector<16x32xf32>
    %20 = arith.mulf %15, %19 : vector<16x32xf32>
    %21 = vector.broadcast %1 : vector<1x32xf32> to vector<16x32xf32>
    %22 = arith.mulf %20, %21 : vector<16x32xf32>
    %23 = vector.broadcast %2 : vector<1x32xf32> to vector<16x32xf32>
    %24 = arith.addf %22, %23 : vector<16x32xf32>
    %c0_9 = arith.constant 0 : index
    %c0_10 = arith.constant 0 : index
    %25 = vector.load %arg3[%c0_9, %c0_10] : memref<32x96xf32, #tpu.memory_space<vmem>>, vector<32x96xf32>
    %cst_11 = arith.constant dense<0.000000e+00> : vector<16x96xf32>
    %26 = tpu.matmul %24, %25, %cst_11 {dimension_numbers = #tpu.dot_dimension_numbers<[1], [0], [0], [1], [0, 0, 1, 1], [], []>} : vector<16x32xf32>, vector<32x96xf32>, vector<16x96xf32> -> vector<16x96xf32>
    %c0_12 = arith.constant 0 : index
    %c0_13 = arith.constant 0 : index
    %27 = vector.load %arg4[%c0_12, %c0_13] : memref<1x96xf32, #tpu.memory_space<vmem>>, vector<1x96xf32>
    %28 = vector.broadcast %27 : vector<1x96xf32> to vector<16x96xf32>
    %29 = arith.addf %26, %28 : vector<16x96xf32>
    %30 = vector.extract_strided_slice %29 {offsets = [0, 0], sizes = [16, 8], strides = [1, 1]} : vector<16x96xf32> to vector<16x8xf32>
    %31 = vector.extract_strided_slice %29 {offsets = [0, 8], sizes = [16, 8], strides = [1, 1]} : vector<16x96xf32> to vector<16x8xf32>
    %32 = vector.extract_strided_slice %29 {offsets = [0, 16], sizes = [16, 8], strides = [1, 1]} : vector<16x96xf32> to vector<16x8xf32>
    %33 = vector.extract_strided_slice %29 {offsets = [0, 24], sizes = [16, 8], strides = [1, 1]} : vector<16x96xf32> to vector<16x8xf32>
    %34 = tpu.concatenate %30, %31, %32, %33 in 0 : vector<16x8xf32>, vector<16x8xf32>, vector<16x8xf32>, vector<16x8xf32> -> vector<64x8xf32>
    %35 = vector.extract_strided_slice %29 {offsets = [0, 32], sizes = [16, 8], strides = [1, 1]} : vector<16x96xf32> to vector<16x8xf32>
    %36 = vector.extract_strided_slice %29 {offsets = [0, 40], sizes = [16, 8], strides = [1, 1]} : vector<16x96xf32> to vector<16x8xf32>
    %37 = vector.extract_strided_slice %29 {offsets = [0, 48], sizes = [16, 8], strides = [1, 1]} : vector<16x96xf32> to vector<16x8xf32>
    %38 = vector.extract_strided_slice %29 {offsets = [0, 56], sizes = [16, 8], strides = [1, 1]} : vector<16x96xf32> to vector<16x8xf32>
    %39 = tpu.concatenate %35, %36, %37, %38 in 0 : vector<16x8xf32>, vector<16x8xf32>, vector<16x8xf32>, vector<16x8xf32> -> vector<64x8xf32>
    %40 = vector.extract_strided_slice %29 {offsets = [0, 64], sizes = [16, 8], strides = [1, 1]} : vector<16x96xf32> to vector<16x8xf32>
    %41 = vector.extract_strided_slice %29 {offsets = [0, 72], sizes = [16, 8], strides = [1, 1]} : vector<16x96xf32> to vector<16x8xf32>
    %42 = vector.extract_strided_slice %29 {offsets = [0, 80], sizes = [16, 8], strides = [1, 1]} : vector<16x96xf32> to vector<16x8xf32>
    %43 = vector.extract_strided_slice %29 {offsets = [0, 88], sizes = [16, 8], strides = [1, 1]} : vector<16x96xf32> to vector<16x8xf32>
    %44 = tpu.concatenate %40, %41, %42, %43 in 0 : vector<16x8xf32>, vector<16x8xf32>, vector<16x8xf32>, vector<16x8xf32> -> vector<64x8xf32>
    %45 = tpu.iota {dimensions = array<i32: 0>} : vector<64x64xi32>
    %46 = tpu.iota {dimensions = array<i32: 1>} : vector<64x64xi32>
    %47 = arith.cmpi sle, %46, %45 : vector<64x64xi32>
    %c3_i32 = arith.constant 3 : i32
    %48 = vector.broadcast %c3_i32 : i32 to vector<64x64xi32>
    %49 = arith.shrsi %45, %48 : vector<64x64xi32>
    %c3_i32_14 = arith.constant 3 : i32
    %50 = vector.broadcast %c3_i32_14 : i32 to vector<64x64xi32>
    %51 = arith.shrsi %46, %50 : vector<64x64xi32>
    %52 = arith.cmpi eq, %49, %51 : vector<64x64xi32>
    %53 = arith.andi %47, %52 : vector<64x64xi1>
    %cst_15 = arith.constant 0.000000e+00 : f32
    %cst_16 = arith.constant -1.000000e+30 : f32
    %54 = vector.broadcast %cst_15 : f32 to vector<64x64xf32>
    %55 = vector.broadcast %cst_16 : f32 to vector<64x64xf32>
    %56 = arith.select %53, %54, %55 : vector<64x64xi1>, vector<64x64xf32>
    %cst_17 = arith.constant dense<0.000000e+00> : vector<64x64xf32>
    %57 = tpu.matmul %34, %39, %cst_17 {dimension_numbers = #tpu.dot_dimension_numbers<[1], [1], [0], [0], [0, 0, 1, 0], [], []>} : vector<64x8xf32>, vector<64x8xf32>, vector<64x64xf32> -> vector<64x64xf32>
    %cst_18 = arith.constant 0.353553385 : f32
    %58 = vector.broadcast %cst_18 : f32 to vector<64x64xf32>
    %59 = arith.mulf %57, %58 : vector<64x64xf32>
    %60 = arith.addf %59, %56 : vector<64x64xf32>
    %cst_19 = arith.constant dense<0xFF800000> : vector<64xf32>
    %61 = vector.multi_reduction <maximumf>, %60, %cst_19 [1] : vector<64x64xf32> to vector<64xf32>
    %62 = vector.shape_cast %61 : vector<64xf32> to vector<64x1xf32>
    %63 = vector.broadcast %62 : vector<64x1xf32> to vector<64x64xf32>
    %64 = arith.subf %60, %63 : vector<64x64xf32>
    %65 = math.exp %64 : vector<64x64xf32>
    %cst_20 = arith.constant dense<0.000000e+00> : vector<64xf32>
    %66 = vector.multi_reduction <add>, %65, %cst_20 [1] : vector<64x64xf32> to vector<64xf32>
    %67 = vector.shape_cast %66 : vector<64xf32> to vector<64x1xf32>
    %68 = vector.broadcast %67 : vector<64x1xf32> to vector<64x64xf32>
    %69 = arith.divf %65, %68 : vector<64x64xf32>
    %cst_21 = arith.constant dense<0.000000e+00> : vector<64x8xf32>
    %70 = tpu.matmul %69, %44, %cst_21 {dimension_numbers = #tpu.dot_dimension_numbers<[1], [0], [0], [1], [0, 0, 1, 1], [], []>} : vector<64x64xf32>, vector<64x8xf32>, vector<64x8xf32> -> vector<64x8xf32>
    %71 = vector.extract_strided_slice %70 {offsets = [0, 0], sizes = [16, 8], strides = [1, 1]} : vector<64x8xf32> to vector<16x8xf32>
    %72 = vector.extract_strided_slice %70 {offsets = [16, 0], sizes = [16, 8], strides = [1, 1]} : vector<64x8xf32> to vector<16x8xf32>
    %73 = vector.extract_strided_slice %70 {offsets = [32, 0], sizes = [16, 8], strides = [1, 1]} : vector<64x8xf32> to vector<16x8xf32>
    %74 = vector.extract_strided_slice %70 {offsets = [48, 0], sizes = [16, 8], strides = [1, 1]} : vector<64x8xf32> to vector<16x8xf32>
    %75 = tpu.concatenate %71, %72, %73, %74 in 1 : vector<16x8xf32>, vector<16x8xf32>, vector<16x8xf32>, vector<16x8xf32> -> vector<16x32xf32>
    %c0_22 = arith.constant 0 : index
    %c0_23 = arith.constant 0 : index
    %76 = vector.load %arg5[%c0_22, %c0_23] : memref<32x32xf32, #tpu.memory_space<vmem>>, vector<32x32xf32>
    %cst_24 = arith.constant dense<0.000000e+00> : vector<16x32xf32>
    %77 = tpu.matmul %75, %76, %cst_24 {dimension_numbers = #tpu.dot_dimension_numbers<[1], [0], [0], [1], [0, 0, 1, 1], [], []>} : vector<16x32xf32>, vector<32x32xf32>, vector<16x32xf32> -> vector<16x32xf32>
    %c0_25 = arith.constant 0 : index
    %c0_26 = arith.constant 0 : index
    %78 = vector.load %arg6[%c0_25, %c0_26] : memref<1x32xf32, #tpu.memory_space<vmem>>, vector<1x32xf32>
    %79 = vector.broadcast %78 : vector<1x32xf32> to vector<16x32xf32>
    %80 = arith.addf %77, %79 : vector<16x32xf32>
    %81 = arith.addf %0, %80 : vector<16x32xf32>
    %c0_27 = arith.constant 0 : index
    %c0_28 = arith.constant 0 : index
    %82 = vector.load %arg7[%c0_27, %c0_28] : memref<1x32xf32, #tpu.memory_space<vmem>>, vector<1x32xf32>
    %c0_29 = arith.constant 0 : index
    %c0_30 = arith.constant 0 : index
    %83 = vector.load %arg8[%c0_29, %c0_30] : memref<1x32xf32, #tpu.memory_space<vmem>>, vector<1x32xf32>
    %cst_31 = arith.constant dense<0.000000e+00> : vector<16xf32>
    %84 = vector.multi_reduction <add>, %81, %cst_31 [1] : vector<16x32xf32> to vector<16xf32>
    %85 = vector.shape_cast %84 : vector<16xf32> to vector<16x1xf32>
    %cst_32 = arith.constant 3.200000e+01 : f32
    %86 = vector.broadcast %cst_32 : f32 to vector<16x1xf32>
    %87 = arith.divf %85, %86 : vector<16x1xf32>
    %88 = vector.broadcast %87 : vector<16x1xf32> to vector<16x32xf32>
    %89 = arith.subf %81, %88 : vector<16x32xf32>
    %90 = arith.mulf %89, %89 : vector<16x32xf32>
    %cst_33 = arith.constant dense<0.000000e+00> : vector<16xf32>
    %91 = vector.multi_reduction <add>, %90, %cst_33 [1] : vector<16x32xf32> to vector<16xf32>
    %92 = vector.shape_cast %91 : vector<16xf32> to vector<16x1xf32>
    %cst_34 = arith.constant 3.200000e+01 : f32
    %93 = vector.broadcast %cst_34 : f32 to vector<16x1xf32>
    %94 = arith.divf %92, %93 : vector<16x1xf32>
    %95 = vector.broadcast %87 : vector<16x1xf32> to vector<16x32xf32>
    %96 = arith.subf %81, %95 : vector<16x32xf32>
    %cst_35 = arith.constant 9.99999974E-6 : f32
    %97 = vector.broadcast %cst_35 : f32 to vector<16x1xf32>
    %98 = arith.addf %94, %97 : vector<16x1xf32>
    %99 = math.rsqrt %98 : vector<16x1xf32>
    %100 = vector.broadcast %99 : vector<16x1xf32> to vector<16x32xf32>
    %101 = arith.mulf %96, %100 : vector<16x32xf32>
    %102 = vector.broadcast %82 : vector<1x32xf32> to vector<16x32xf32>
    %103 = arith.mulf %101, %102 : vector<16x32xf32>
    %104 = vector.broadcast %83 : vector<1x32xf32> to vector<16x32xf32>
    %105 = arith.addf %103, %104 : vector<16x32xf32>
    %c0_36 = arith.constant 0 : index
    %c0_37 = arith.constant 0 : index
    %106 = vector.load %arg9[%c0_36, %c0_37] : memref<32x128xf32, #tpu.memory_space<vmem>>, vector<32x128xf32>
    %cst_38 = arith.constant dense<0.000000e+00> : vector<16x128xf32>
    %107 = tpu.matmul %105, %106, %cst_38 {dimension_numbers = #tpu.dot_dimension_numbers<[1], [0], [0], [1], [0, 0, 1, 1], [], []>} : vector<16x32xf32>, vector<32x128xf32>, vector<16x128xf32> -> vector<16x128xf32>
    %c0_39 = arith.constant 0 : index
    %c0_40 = arith.constant 0 : index
    %108 = vector.load %arg10[%c0_39, %c0_40] : memref<1x128xf32, #tpu.memory_space<vmem>>, vector<1x128xf32>
    %109 = vector.broadcast %108 : vector<1x128xf32> to vector<16x128xf32>
    %110 = arith.addf %107, %109 : vector<16x128xf32>
    %cst_41 = arith.constant 5.000000e-01 : f32
    %111 = vector.broadcast %cst_41 : f32 to vector<16x128xf32>
    %112 = arith.mulf %111, %110 : vector<16x128xf32>
    %cst_42 = arith.constant 4.471500e-02 : f32
    %113 = vector.broadcast %cst_42 : f32 to vector<16x128xf32>
    %114 = arith.mulf %113, %110 : vector<16x128xf32>
    %115 = arith.mulf %114, %110 : vector<16x128xf32>
    %116 = arith.mulf %115, %110 : vector<16x128xf32>
    %117 = arith.addf %110, %116 : vector<16x128xf32>
    %cst_43 = arith.constant 0.797884583 : f32
    %118 = vector.broadcast %cst_43 : f32 to vector<16x128xf32>
    %119 = arith.mulf %118, %117 : vector<16x128xf32>
    %120 = math.tanh %119 : vector<16x128xf32>
    %cst_44 = arith.constant 1.000000e+00 : f32
    %121 = vector.broadcast %cst_44 : f32 to vector<16x128xf32>
    %122 = arith.addf %121, %120 : vector<16x128xf32>
    %123 = arith.mulf %112, %122 : vector<16x128xf32>
    %c0_45 = arith.constant 0 : index
    %c0_46 = arith.constant 0 : index
    %124 = vector.load %arg11[%c0_45, %c0_46] : memref<128x32xf32, #tpu.memory_space<vmem>>, vector<128x32xf32>
    %cst_47 = arith.constant dense<0.000000e+00> : vector<16x32xf32>
    %125 = tpu.matmul %123, %124, %cst_47 {dimension_numbers = #tpu.dot_dimension_numbers<[1], [0], [0], [1], [0, 0, 1, 1], [], []>} : vector<16x128xf32>, vector<128x32xf32>, vector<16x32xf32> -> vector<16x32xf32>
    %c0_48 = arith.constant 0 : index
    %c0_49 = arith.constant 0 : index
    %126 = vector.load %arg12[%c0_48, %c0_49] : memref<1x32xf32, #tpu.memory_space<vmem>>, vector<1x32xf32>
    %127 = vector.broadcast %126 : vector<1x32xf32> to vector<16x32xf32>
    %128 = arith.addf %125, %127 : vector<16x32xf32>
    %129 = arith.addf %81, %128 : vector<16x32xf32>
    %c0_50 = arith.constant 0 : index
    %c0_51 = arith.constant 0 : index
    %130 = vector.load %arg13[%c0_50, %c0_51] : memref<16x32xf32, #tpu.memory_space<vmem>>, vector<16x32xf32>
    tpu.vector_store %arg13[%c0_50, %c0_51], %129 {strides = array<i32>} : memref<16x32xf32, #tpu.memory_space<vmem>>, vector<16x32xf32>,
    return
  }
}

</mosaic_0001>

<llo_original>
// kernel: tpu_custom_call.1
$region0: #{tpu_custom_call.1}
  #allocation0 [shape = 'u32[]', space=smem, size = 0x4, offset = 0x4, fixed_abs, tag = 'smem constant byte address 0x4 - core index']
  #allocation1 [shape = 'u32[144,128]{1,0:T(1,128)}', space=vmem, size = 0x12000, scoped, tag = 'internal scratch']
  %s0 = inlined_call_operand.vmem [shape: f32[16,32], index: 0, kind: input, shape index: {}]
  %s1 = inlined_call_operand.vmem [shape: f32[1,32], index: 1, kind: input, shape index: {}]
  %s2 = inlined_call_operand.vmem [shape: f32[1,32], index: 2, kind: input, shape index: {}]
  %s3 = inlined_call_operand.vmem [shape: f32[32,96], index: 3, kind: input, shape index: {}]
  %s4 = inlined_call_operand.vmem [shape: f32[1,96], index: 4, kind: input, shape index: {}]
  %s5 = inlined_call_operand.vmem [shape: f32[32,32], index: 5, kind: input, shape index: {}]
  %s6 = inlined_call_operand.vmem [shape: f32[1,32], index: 6, kind: input, shape index: {}]
  %s7 = inlined_call_operand.vmem [shape: f32[1,32], index: 7, kind: input, shape index: {}]
  %s8 = inlined_call_operand.vmem [shape: f32[1,32], index: 8, kind: input, shape index: {}]
  %s9 = inlined_call_operand.vmem [shape: f32[32,128], index: 9, kind: input, shape index: {}]
  %s10 = inlined_call_operand.vmem [shape: f32[1,128], index: 10, kind: input, shape index: {}]
  %s11 = inlined_call_operand.vmem [shape: f32[128,32], index: 11, kind: input, shape index: {}]
  %s12 = inlined_call_operand.vmem [shape: f32[1,32], index: 12, kind: input, shape index: {}]
  %s13 = inlined_call_operand.hbm [shape: f32[16,32], index: 13, kind: output, shape index: {}]
  %s14 = sld [smem:[#allocation0]]
  $region62: #{tpu_custom_call.1} parent=0
    _
  %s16 = ssub.s32 1, %s14
  %s17 = scalar_select 0, %s16, %s14
  $region1: #{tpu_custom_call.1} parent=0
    #allocation2 [shape = 'u8[8192]{0}', space=vmem, size = 0x2000, scoped, tag = 'output window, operand 0, single buffered']
    #allocation3 [shape = 's32[1]{0}', space=sflag, size = 0x4, scoped, tag = 'scoped memory for tpu_custom_call.1']
    %18 = vsyncpa [#allocation3], 0
    // Predicated region
    $region2: #{tpu_custom_call.1} parent=1 // pred_check
      _
    $region3: #{tpu_custom_call.1} parent=1 // pred_check_branch
      %20 = sbr.rel (0) target = $region5
    $region4: #{tpu_custom_call.1} parent=1 // pred_region
      _
    $region5: #{tpu_custom_call.1} parent=1 // pred_fallthru
      _
    // Predicated region
    $region6: #{tpu_custom_call.1} parent=1 // pred_check
      _
    $region7: #{tpu_custom_call.1} parent=1 // pred_check_branch
      %22 = sbr.rel (0) target = $region9
    $region8: #{tpu_custom_call.1} parent=1 // pred_region
      _
    $region9: #{tpu_custom_call.1} parent=1 // pred_fallthru
      _
    // Predicated region
    $region10: #{tpu_custom_call.1} parent=1 // pred_check
      _
    $region11: #{tpu_custom_call.1} parent=1 // pred_check_branch
      %24 = sbr.rel (0) target = $region13
    $region12: #{tpu_custom_call.1} parent=1 // pred_region
      _
    $region13: #{tpu_custom_call.1} parent=1 // pred_fallthru
      _
    // Predicated region
    $region14: #{tpu_custom_call.1} parent=1 // pred_check
      _
    $region15: #{tpu_custom_call.1} parent=1 // pred_check_branch
      %26 = sbr.rel (0) target = $region17
    $region16: #{tpu_custom_call.1} parent=1 // pred_region
      _
    $region17: #{tpu_custom_call.1} parent=1 // pred_fallthru
      _
    // Predicated region
    $region18: #{tpu_custom_call.1} parent=1 // pred_check
      _
    $region19: #{tpu_custom_call.1} parent=1 // pred_check_branch
      %28 = sbr.rel (0) target = $region21
    $region20: #{tpu_custom_call.1} parent=1 // pred_region
      _
    $region21: #{tpu_custom_call.1} parent=1 // pred_fallthru
      _
    // Predicated region
    $region22: #{tpu_custom_call.1} parent=1 // pred_check
      _
    $region23: #{tpu_custom_call.1} parent=1 // pred_check_branch
      %30 = sbr.rel (0) target = $region25
    $region24: #{tpu_custom_call.1} parent=1 // pred_region
      _
    $region25: #{tpu_custom_call.1} parent=1 // pred_fallthru
      _
    // Predicated region
    $region26: #{tpu_custom_call.1} parent=1 // pred_check
      _
    $region27: #{tpu_custom_call.1} parent=1 // pred_check_branch
      %32 = sbr.rel (0) target = $region29
    $region28: #{tpu_custom_call.1} parent=1 // pred_region
      _
    $region29: #{tpu_custom_call.1} parent=1 // pred_fallthru
      _
    // Predicated region
    $region30: #{tpu_custom_call.1} parent=1 // pred_check
      _
    $region31: #{tpu_custom_call.1} parent=1 // pred_check_branch
      %34 = sbr.rel (0) target = $region33
    $region32: #{tpu_custom_call.1} parent=1 // pred_region
      _
    $region33: #{tpu_custom_call.1} parent=1 // pred_fallthru
      _
    // Predicated region
    $region34: #{tpu_custom_call.1} parent=1 // pred_check
      _
    $region35: #{tpu_custom_call.1} parent=1 // pred_check_branch
      %36 = sbr.rel (0) target = $region37
    $region36: #{tpu_custom_call.1} parent=1 // pred_region
      _
    $region37: #{tpu_custom_call.1} parent=1 // pred_fallthru
      _
    // Predicated region
    $region38: #{tpu_custom_call.1} parent=1 // pred_check
      _
    $region39: #{tpu_custom_call.1} parent=1 // pred_check_branch
      %38 = sbr.rel (0) target = $region41
    $region40: #{tpu_custom_call.1} parent=1 // pred_region
      _
    $region41: #{tpu_custom_call.1} parent=1 // pred_fallthru
      _
    // Predicated region
    $region42: #{tpu_custom_call.1} parent=1 // pred_check
      _
    $region43: #{tpu_custom_call.1} parent=1 // pred_check_branch
      %40 = sbr.rel (0) target = $region45
    $region44: #{tpu_custom_call.1} parent=1 // pred_region
      _
    $region45: #{tpu_custom_call.1} parent=1 // pred_fallthru
      _
    // Predicated region
    $region46: #{tpu_custom_call.1} parent=1 // pred_check
      _
    $region47: #{tpu_custom_call.1} parent=1 // pred_check_branch
      %42 = sbr.rel (0) target = $region49
    $region48: #{tpu_custom_call.1} parent=1 // pred_region
      _
    $region49: #{tpu_custom_call.1} parent=1 // pred_fallthru
      _
    // Predicated region
    $region50: #{tpu_custom_call.1} parent=1 // pred_check
      _
    $region51: #{tpu_custom_call.1} parent=1 // pred_check_branch
      %44 = sbr.rel (0) target = $region53
    $region52: #{tpu_custom_call.1} parent=1 // pred_region
      _
    $region53: #{tpu_custom_call.1} parent=1 // pred_fallthru
      _
    %v45 = vld [vmem:[%s0] sm:$0xff]
    %v46 = vld [vmem:[%s0 + $0x8] sm:$0xff]
    %v47 = vld [vmem:[%s1] sm:$0x1]
    %v48 = vld [vmem:[%s2] sm:$0x1]
    %vm49 = vcmask 261120
    %v50 = vsel %vm49, %v45, 0.0
    %51 = vadd.xlane.f32.xlu0 %v50
    %v52 = vpop.xlane.xlu0 %51
    %v53 = vsel %vm49, %v46, 0.0
    %54 = vadd.xlane.f32.xlu0 %v53
    %v55 = vpop.xlane.xlu0 %54
    %v56 = vrcp.pop 32.0
    %v57 = vmul.f32 %v52, %v56
    %v58 = vmul.f32 %v55, %v56
    %v59 = vsub.f32 %v45, %v57
    %v60 = vsub.f32 %v46, %v58
    %v61 = vmul.f32 %v59, %v59
    %v62 = vmul.f32 %v60, %v60
    %v63 = vsel %vm49, %v61, 0.0
    %64 = vadd.xlane.f32.xlu0 %v63
    %v65 = vpop.xlane.xlu0 %64
    %v66 = vsel %vm49, %v62, 0.0
    %67 = vadd.xlane.f32.xlu0 %v66
    %v68 = vpop.xlane.xlu0 %67
    %v69 = vmul.f32 %v65, %v56
    %v70 = vmul.f32 %v68, %v56
    %v71 = vadd.f32 %v69, 1e-05
    %v72 = vadd.f32 %v70, 1e-05
    %v73 = vrsqrt.pop %v71
    %v74 = vrsqrt.pop %v72
    %v75 = vmul.f32 %v59, %v73
    %v76 = vmul.f32 %v60, %v74
    %v78 = vlaneseq
    %v79 = vshrl.u32 %v78, 7
    %v80 = vsub.s32 0, %v79
    %v81 = vrot.slane %v47, %v80
    %v83 = vmul.f32 %v75, %v81
    %v84 = vmul.f32 %v76, %v81
    %v86 = vlaneseq
    %v87 = vshrl.u32 %v86, 7
    %v88 = vsub.s32 0, %v87
    %v89 = vrot.slane %v48, %v88
    %v91 = vadd.f32 %v83, %v89
    %v92 = vadd.f32 %v84, %v89
    %v93 = vld [vmem:[%s3] sm:$0xff]
    %v94 = vld [vmem:[%s3 + $0x8] sm:$0xff]
    %v95 = vld [vmem:[%s3 + $0x10] sm:$0xff]
    %v96 = vld [vmem:[%s3 + $0x18] sm:$0xff]
    %v97 = vld [vmem:[%s4] sm:$0x1]
    %v99 = vlaneseq
    %v100 = vshrl.u32 %v99, 7
    %v101 = vsub.s32 0, %v100
    %v102 = vrot.slane %v97, %v101
    %v105 = vsel %vm49, %v91, 0
    %v108 = vsel %vm49, %v92, 0
    %110 = vmatprep.subr.mxu0 0.0
    %111 = vmatpush1.msra.mxu0 %v93
    %112 = vmatprep.subr.mxu0 0.0
    %113 = vmatpush1.msra.mxu0 %v94
    %114 = vmatprep.subr.mxu0 0.0
    %115 = vmatpush1.msra.mxu0 %v95
    %116 = vmatprep.subr.mxu0 0.0
    %117 = vmatpush1.msra.mxu0 %v96
    %118 = vmatprep.subr.mxu0 0.0
    %119 = vmatpush1.msra.mxu0 0.0
    %120 = vmatprep.subr.mxu0 0.0
    %121 = vmatpush1.msra.mxu0 0.0
    %122 = vmatprep.subr.mxu0 0.0
    %123 = vmatpush1.msra.mxu0 0.0
    %124 = vmatprep.subr.mxu0 0.0
    %125 = vmatpush1.msra.mxu0 0.0
    %126 = vmatprep.subr.mxu0 0.0
    %127 = vmatpush1.msra.mxu0 0.0
    %128 = vmatprep.subr.mxu0 0.0
    %129 = vmatpush1.msra.mxu0 0.0
    %130 = vmatprep.subr.mxu0 0.0
    %131 = vmatpush1.msra.mxu0 0.0
    %132 = vmatprep.subr.mxu0 0.0
    %133 = vmatpush1.msra.mxu0 0.0
    %134 = vmatprep.subr.mxu0 0.0
    %135 = vmatpush1.msra.mxu0 0.0
    %136 = vmatprep.subr.mxu0 0.0
    %137 = vmatpush1.msra.mxu0 0.0
    %138 = vmatprep.subr.mxu0 0.0
    %139 = vmatpush1.msra.mxu0 0.0
    %140 = vmatprep.subr.mxu0 0.0
    %141 = vmatpush1.msra.mxu0 0.0
    %142 = vmatprep.subr.mxu0 0.0
    %143 = vmatpush1.msra.mxu0 0.0
    %144 = vmatprep.subr.mxu0 0.0
    %145 = vmatpush1.msra.mxu0 0.0
    %146 = vmatprep.subr.mxu0 0.0
    %147 = vmatpush1.msra.mxu0 0.0
    %148 = vmatprep.subr.mxu0 0.0
    %149 = vmatpush1.msra.mxu0 0.0
    %150 = vmatprep.subr.mxu0 0.0
    %151 = vmatpush1.msra.mxu0 0.0
    %152 = vmatprep.subr.mxu0 0.0
    %153 = vmatpush1.msra.mxu0 0.0
    %154 = vmatprep.subr.mxu0 0.0
    %155 = vmatpush1.msra.mxu0 0.0
    %156 = vmatprep.subr.mxu0 0.0
    %157 = vmatpush1.msra.mxu0 0.0
    %158 = vmatprep.subr.mxu0 0.0
    %159 = vmatpush1.msra.mxu0 0.0
    %160 = vmatprep.subr.mxu0 0.0
    %161 = vmatpush1.msra.mxu0 0.0
    %162 = vmatprep.subr.mxu0 0.0
    %163 = vmatpush1.msra.mxu0 0.0
    %164 = vmatprep.subr.mxu0 0.0
    %165 = vmatpush1.msra.mxu0 0.0
    %166 = vmatprep.subr.mxu0 0.0
    %167 = vmatpush1.msra.mxu0 0.0
    %168 = vmatprep.subr.mxu0 0.0
    %169 = vmatpush1.msra.mxu0 0.0
    %170 = vmatprep.subr.mxu0 0.0
    %171 = vmatpush1.msra.mxu0 0.0
    %172 = vmatprep.subr.mxu0 0.0
    %173 = vmatpush1.msra.mxu0 0.0
    %174 = vmatprep.mubr.f32.mxu0 0.0
    %175 = vmatmul.mubr.f32.gmra.mrb[0].mxu0 %v105
    %v176 = vpop.f32.mrb[0].mxu0
    %v177 = vadd.f32 %v102, %v176
    %v178 = vpop.f32.mrb[0].mxu0
    %179 = vmatprep.mubr.f32.mxu0 0.0
    %180 = vmatmul.mubr.f32.gmra.mrb[0].mxu0 %v108
    %v181 = vpop.f32.mrb[0].mxu0
    %v182 = vadd.f32 %v102, %v181
    %v183 = vpop.f32.mrb[0].mxu0
    %184 = vdwg.mxu0
    %187 = vrot.lane.b32.xlu0 %v177, 120
    %v188 = vpop.permute.xlu0 %187
    %189 = vrot.lane.b32.xlu0 %v182, 120
    %v190 = vpop.permute.xlu0 %189
    %191 = vrot.lane.b32.xlu0 %v177, 112
    %v192 = vpop.permute.xlu0 %191
    %193 = vrot.lane.b32.xlu0 %v182, 112
    %v194 = vpop.permute.xlu0 %193
    %195 = vrot.lane.b32.xlu0 %v177, 104
    %v196 = vpop.permute.xlu0 %195
    %197 = vrot.lane.b32.xlu0 %v182, 104
    %v198 = vpop.permute.xlu0 %197
    %v199 = vlaneseq
    %v200 = vshrl.u32 %v199, 7
    %v201 = vadd.s32 %v200, 8
    %v202 = vadd.s32 %v200, 16
    %v203 = vadd.s32 %v200, 24
    %v204 = vadd.s32 %v200, 32
    %v205 = vadd.s32 %v200, 40
    %v206 = vadd.s32 %v200, 48
    %v207 = vadd.s32 %v200, 56
    %v208 = vlaneseq
    %v209 = vand.u32 %v208, 127
    %vm210 = vcmp.le.s32.totalorder %v209, %v200
    %vm211 = vcmp.le.s32.totalorder %v209, %v201
    %vm212 = vcmp.le.s32.totalorder %v209, %v202
    %vm213 = vcmp.le.s32.totalorder %v209, %v203
    %vm214 = vcmp.le.s32.totalorder %v209, %v204
    %vm215 = vcmp.le.s32.totalorder %v209, %v205
    %vm216 = vcmp.le.s32.totalorder %v209, %v206
    %vm217 = vcmp.le.s32.totalorder %v209, %v207
    %v218 = vshra.s32 %v200, 3
    %v219 = vshra.s32 %v201, 3
    %v220 = vshra.s32 %v202, 3
    %v221 = vshra.s32 %v203, 3
    %v222 = vshra.s32 %v204, 3
    %v223 = vshra.s32 %v205, 3
    %v224 = vshra.s32 %v206, 3
    %v225 = vshra.s32 %v207, 3
    %v226 = vshra.s32 %v209, 3
    %vm227 = vcmp.eq.s32.totalorder %v218, %v226
    %vm228 = vcmp.eq.s32.totalorder %v219, %v226
    %vm229 = vcmp.eq.s32.totalorder %v220, %v226
    %vm230 = vcmp.eq.s32.totalorder %v221, %v226
    %vm231 = vcmp.eq.s32.totalorder %v222, %v226
    %vm232 = vcmp.eq.s32.totalorder %v223, %v226
    %vm233 = vcmp.eq.s32.totalorder %v224, %v226
    %vm234 = vcmp.eq.s32.totalorder %v225, %v226
    %vm235 = vmand %vm210, %vm227
    %vm236 = vmand %vm211, %vm228
    %vm237 = vmand %vm212, %vm229
    %vm238 = vmand %vm213, %vm230
    %vm239 = vmand %vm214, %vm231
    %vm240 = vmand %vm215, %vm232
    %vm241 = vmand %vm216, %vm233
    %vm242 = vmand %vm217, %vm234
    %v243 = vsel %vm235, 0.0, -1e+30
    %v244 = vsel %vm236, 0.0, -1e+30
    %v245 = vsel %vm237, 0.0, -1e+30
    %v246 = vsel %vm238, 0.0, -1e+30
    %v247 = vsel %vm239, 0.0, -1e+30
    %v248 = vsel %vm240, 0.0, -1e+30
    %v249 = vsel %vm241, 0.0, -1e+30
    %v250 = vsel %vm242, 0.0, -1e+30
    %251 = vrot.lane.b32.xlu0 %v177, 96
    %v252 = vpop.permute.xlu0 %251
    %253 = vrot.lane.b32.xlu0 %v182, 96
    %v254 = vpop.permute.xlu0 %253
    %255 = vrot.lane.b32.xlu0 %v188, 96
    %v256 = vpop.permute.xlu0 %255
    %257 = vrot.lane.b32.xlu0 %v190, 96
    %v258 = vpop.permute.xlu0 %257
    %259 = vrot.lane.b32.xlu0 %v192, 96
    %v260 = vpop.permute.xlu0 %259
    %261 = vrot.lane.b32.xlu0 %v194, 96
    %v262 = vpop.permute.xlu0 %261
    %263 = vrot.lane.b32.xlu0 %v196, 96
    %v264 = vpop.permute.xlu0 %263
    %265 = vrot.lane.b32.xlu0 %v198, 96
    %v266 = vpop.permute.xlu0 %265
    %vm267 = vcmask 64512
    %v268 = vsel %vm267, %v177, 0
    %v270 = vsel %vm267, %v182, 0
    %v272 = vsel %vm267, %v188, 0
    %v274 = vsel %vm267, %v190, 0
    %v276 = vsel %vm267, %v192, 0
    %v278 = vsel %vm267, %v194, 0
    %v280 = vsel %vm267, %v196, 0
    %v282 = vsel %vm267, %v198, 0
    %v284 = vsel %vm267, %v252, 0
    %v286 = vsel %vm267, %v254, 0
    %v288 = vsel %vm267, %v256, 0
    %v290 = vsel %vm267, %v258, 0
    %v292 = vsel %vm267, %v260, 0
    %v294 = vsel %vm267, %v262, 0
    %v296 = vsel %vm267, %v264, 0
    %v298 = vsel %vm267, %v266, 0
    %300 = vmatprep.subr.mxu0 0.0
    %301 = vmatpush1.xpose.msra.mxu0 %v284
    %302 = vmatprep.subr.mxu0 0.0
    %303 = vmatpush1.xpose.msra.mxu0 %v286
    %304 = vmatprep.subr.mxu0 0.0
    %305 = vmatpush1.xpose.msra.mxu0 %v288
    %306 = vmatprep.subr.mxu0 0.0
    %307 = vmatpush1.xpose.msra.mxu0 %v290
    %308 = vmatprep.subr.mxu0 0.0
    %309 = vmatpush1.xpose.msra.mxu0 %v292
    %310 = vmatprep.subr.mxu0 0.0
    %311 = vmatpush1.xpose.msra.mxu0 %v294
    %312 = vmatprep.subr.mxu0 0.0
    %313 = vmatpush1.xpose.msra.mxu0 %v296
    %314 = vmatprep.subr.mxu0 0.0
    %315 = vmatpush1.xpose.msra.mxu0 %v298
    %316 = vmatprep.subr.mxu0 0.0
    %317 = vmatpush1.xpose.msra.mxu0 0.0
    %318 = vmatprep.subr.mxu0 0.0
    %319 = vmatpush1.xpose.msra.mxu0 0.0
    %320 = vmatprep.subr.mxu0 0.0
    %321 = vmatpush1.xpose.msra.mxu0 0.0
    %322 = vmatprep.subr.mxu0 0.0
    %323 = vmatpush1.xpose.msra.mxu0 0.0
    %324 = vmatprep.subr.mxu0 0.0
    %325 = vmatpush1.xpose.msra.mxu0 0.0
    %326 = vmatprep.subr.mxu0 0.0
    %327 = vmatpush1.xpose.msra.mxu0 0.0
    %328 = vmatprep.subr.mxu0 0.0
    %329 = vmatpush1.xpose.msra.mxu0 0.0
    %330 = vmatprep.subr.mxu0 0.0
    %331 = vmatpush1.xpose.msra.mxu0 0.0
    %332 = vmatprep.subr.mxu0 0.0
    %333 = vmatpush1.xpose.msra.mxu0 0.0
    %334 = vmatprep.subr.mxu0 0.0
    %335 = vmatpush1.xpose.msra.mxu0 0.0
    %336 = vmatprep.subr.mxu0 0.0
    %337 = vmatpush1.xpose.msra.mxu0 0.0
    %338 = vmatprep.subr.mxu0 0.0
    %339 = vmatpush1.xpose.msra.mxu0 0.0
    %340 = vmatprep.subr.mxu0 0.0
    %341 = vmatpush1.xpose.msra.mxu0 0.0
    %342 = vmatprep.subr.mxu0 0.0
    %343 = vmatpush1.xpose.msra.mxu0 0.0
    %344 = vmatprep.subr.mxu0 0.0
    %345 = vmatpush1.xpose.msra.mxu0 0.0
    %346 = vmatprep.subr.mxu0 0.0
    %347 = vmatpush1.xpose.msra.mxu0 0.0
    %348 = vmatprep.subr.mxu0 0.0
    %349 = vmatpush1.xpose.msra.mxu0 0.0
    %350 = vmatprep.subr.mxu0 0.0
    %351 = vmatpush1.xpose.msra.mxu0 0.0
    %352 = vmatprep.subr.mxu0 0.0
    %353 = vmatpush1.xpose.msra.mxu0 0.0
    %354 = vmatprep.subr.mxu0 0.0
    %355 = vmatpush1.xpose.msra.mxu0 0.0
    %356 = vmatprep.subr.mxu0 0.0
    %357 = vmatpush1.xpose.msra.mxu0 0.0
    %358 = vmatprep.subr.mxu0 0.0
    %359 = vmatpush1.xpose.msra.mxu0 0.0
    %360 = vmatprep.subr.mxu0 0.0
    %361 = vmatpush1.xpose.msra.mxu0 0.0
    %362 = vmatprep.subr.mxu0 0.0
    %363 = vmatpush1.xpose.msra.mxu0 0.0
    %364 = vmatprep.mubr.f32.mxu0 0.0
    %365 = vmatmul.mubr.f32.gmra.mrb[0].mxu0 %v268
    %v366 = vpop.f32.mrb[0].mxu0
    %v367 = vadd.f32 0.0, %v366
    %v368 = vpop.f32.mrb[0].mxu0
    %369 = vmatprep.mubr.f32.mxu0 0.0
    %370 = vmatmul.mubr.f32.gmra.mrb[0].mxu0 %v270
    %v371 = vpop.f32.mrb[0].mxu0
    %v372 = vadd.f32 0.0, %v371
    %v373 = vpop.f32.mrb[0].mxu0
    %374 = vmatprep.mubr.f32.mxu0 0.0
    %375 = vmatmul.mubr.f32.gmra.mrb[0].mxu0 %v272
    %v376 = vpop.f32.mrb[0].mxu0
    %v377 = vadd.f32 0.0, %v376
    %v378 = vpop.f32.mrb[0].mxu0
    %379 = vmatprep.mubr.f32.mxu0 0.0
    %380 = vmatmul.mubr.f32.gmra.mrb[0].mxu0 %v274
    %v381 = vpop.f32.mrb[0].mxu0
    %v382 = vadd.f32 0.0, %v381
    %v383 = vpop.f32.mrb[0].mxu0
    %384 = vmatprep.mubr.f32.mxu0 0.0
    %385 = vmatmul.mubr.f32.gmra.mrb[0].mxu0 %v276
    %v386 = vpop.f32.mrb[0].mxu0
    %v387 = vadd.f32 0.0, %v386
    %v388 = vpop.f32.mrb[0].mxu0
    %389 = vmatprep.mubr.f32.mxu0 0.0
    %390 = vmatmul.mubr.f32.gmra.mrb[0].mxu0 %v278
    %v391 = vpop.f32.mrb[0].mxu0
    %v392 = vadd.f32 0.0, %v391
    %v393 = vpop.f32.mrb[0].mxu0
    %394 = vmatprep.mubr.f32.mxu0 0.0
    %395 = vmatmul.mubr.f32.gmra.mrb[0].mxu0 %v280
    %v396 = vpop.f32.mrb[0].mxu0
    %v397 = vadd.f32 0.0, %v396
    %v398 = vpop.f32.mrb[0].mxu0
    %399 = vmatprep.mubr.f32.mxu0 0.0
    %400 = vmatmul.mubr.f32.gmra.mrb[0].mxu0 %v282
    %v401 = vpop.f32.mrb[0].mxu0
    %v402 = vadd.f32 0.0, %v401
    %v403 = vpop.f32.mrb[0].mxu0
    %404 = vdwg.mxu0
    %v405 = vmul.f32 %v367, 0.35355338
    %v406 = vmul.f32 %v372, 0.35355338
    %v407 = vmul.f32 %v377, 0.35355338
    %v408 = vmul.f32 %v382, 0.35355338
    %v409 = vmul.f32 %v387, 0.35355338
    %v410 = vmul.f32 %v392, 0.35355338
    %v411 = vmul.f32 %v397, 0.35355338
    %v412 = vmul.f32 %v402, 0.35355338
    %v413 = vadd.f32 %v405, %v243
    %v414 = vadd.f32 %v406, %v244
    %v415 = vadd.f32 %v407, %v245
    %v416 = vadd.f32 %v408, %v246
    %v417 = vadd.f32 %v409, %v247
    %v418 = vadd.f32 %v410, %v248
    %v419 = vadd.f32 %v411, %v249
    %v420 = vadd.f32 %v412, %v250
    %vm421 = vcmask 523264
    %v422 = vsel %vm421, %v413, -inf
    %423 = vmax.xlane.f32.xlu0 %v422
    %v424 = vpop.xlane.xlu0 %423
    %v425 = vsel %vm421, %v414, -inf
    %426 = vmax.xlane.f32.xlu0 %v425
    %v427 = vpop.xlane.xlu0 %426
    %v428 = vsel %vm421, %v415, -inf
    %429 = vmax.xlane.f32.xlu0 %v428
    %v430 = vpop.xlane.xlu0 %429
    %v431 = vsel %vm421, %v416, -inf
    %432 = vmax.xlane.f32.xlu0 %v431
    %v433 = vpop.xlane.xlu0 %432
    %v434 = vsel %vm421, %v417, -inf
    %435 = vmax.xlane.f32.xlu0 %v434
    %v436 = vpop.xlane.xlu0 %435
    %v437 = vsel %vm421, %v418, -inf
    %438 = vmax.xlane.f32.xlu0 %v437
    %v439 = vpop.xlane.xlu0 %438
    %v440 = vsel %vm421, %v419, -inf
    %441 = vmax.xlane.f32.xlu0 %v440
    %v442 = vpop.xlane.xlu0 %441
    %v443 = vsel %vm421, %v420, -inf
    %444 = vmax.xlane.f32.xlu0 %v443
    %v445 = vpop.xlane.xlu0 %444
    %v446 = vsub.f32 %v413, %v424
    %v447 = vsub.f32 %v414, %v427
    %v448 = vsub.f32 %v415, %v430
    %v449 = vsub.f32 %v416, %v433
    %v450 = vsub.f32 %v417, %v436
    %v451 = vsub.f32 %v418, %v439
    %v452 = vsub.f32 %v419, %v442
    %v453 = vsub.f32 %v420, %v445
    %v454 = vmul.f32 %v446, 1.442695
    %v455 = vpow.pop %v454
    %v456 = vmul.f32 %v447, 1.442695
    %v457 = vpow.pop %v456
    %v458 = vmul.f32 %v448, 1.442695
    %v459 = vpow.pop %v458
    %v460 = vmul.f32 %v449, 1.442695
    %v461 = vpow.pop %v460
    %v462 = vmul.f32 %v450, 1.442695
    %v463 = vpow.pop %v462
    %v464 = vmul.f32 %v451, 1.442695
    %v465 = vpow.pop %v464
    %v466 = vmul.f32 %v452, 1.442695
    %v467 = vpow.pop %v466
    %v468 = vmul.f32 %v453, 1.442695
    %v469 = vpow.pop %v468
    %v470 = vsel %vm421, %v455, 0.0
    %471 = vadd.xlane.f32.xlu0 %v470
    %v472 = vpop.xlane.xlu0 %471
    %v473 = vsel %vm421, %v457, 0.0
    %474 = vadd.xlane.f32.xlu0 %v473
    %v475 = vpop.xlane.xlu0 %474
    %v476 = vsel %vm421, %v459, 0.0
    %477 = vadd.xlane.f32.xlu0 %v476
    %v478 = vpop.xlane.xlu0 %477
    %v479 = vsel %vm421, %v461, 0.0
    %480 = vadd.xlane.f32.xlu0 %v479
    %v481 = vpop.xlane.xlu0 %480
    %v482 = vsel %vm421, %v463, 0.0
    %483 = vadd.xlane.f32.xlu0 %v482
    %v484 = vpop.xlane.xlu0 %483
    %v485 = vsel %vm421, %v465, 0.0
    %486 = vadd.xlane.f32.xlu0 %v485
    %v487 = vpop.xlane.xlu0 %486
    %v488 = vsel %vm421, %v467, 0.0
    %489 = vadd.xlane.f32.xlu0 %v488
    %v490 = vpop.xlane.xlu0 %489
    %v491 = vsel %vm421, %v469, 0.0
    %492 = vadd.xlane.f32.xlu0 %v491
    %v493 = vpop.xlane.xlu0 %492
    %v494 = vrcp.pop %v472
    %v495 = vmul.f32 %v455, %v494
    %v496 = vrcp.pop %v475
    %v497 = vmul.f32 %v457, %v496
    %v498 = vrcp.pop %v478
    %v499 = vmul.f32 %v459, %v498
    %v500 = vrcp.pop %v481
    %v501 = vmul.f32 %v461, %v500
    %v502 = vrcp.pop %v484
    %v503 = vmul.f32 %v463, %v502
    %v504 = vrcp.pop %v487
    %v505 = vmul.f32 %v465, %v504
    %v506 = vrcp.pop %v490
    %v507 = vmul.f32 %v467, %v506
    %v508 = vrcp.pop %v493
    %v509 = vmul.f32 %v469, %v508
    %510 = vrot.lane.b32.xlu0 %v177, 64
    %v511 = vpop.permute.xlu0 %510
    %512 = vrot.lane.b32.xlu0 %v182, 64
    %v513 = vpop.permute.xlu0 %512
    %514 = vrot.lane.b32.xlu0 %v188, 64
    %v515 = vpop.permute.xlu0 %514
    %516 = vrot.lane.b32.xlu0 %v190, 64
    %v517 = vpop.permute.xlu0 %516
    %518 = vrot.lane.b32.xlu0 %v192, 64
    %v519 = vpop.permute.xlu0 %518
    %520 = vrot.lane.b32.xlu0 %v194, 64
    %v521 = vpop.permute.xlu0 %520
    %522 = vrot.lane.b32.xlu0 %v196, 64
    %v523 = vpop.permute.xlu0 %522
    %524 = vrot.lane.b32.xlu0 %v198, 64
    %v525 = vpop.permute.xlu0 %524
    %v535 = vsel %vm421, %v495, 0
    %v538 = vsel %vm421, %v497, 0
    %v541 = vsel %vm421, %v499, 0
    %v544 = vsel %vm421, %v501, 0
    %v547 = vsel %vm421, %v503, 0
    %v550 = vsel %vm421, %v505, 0
    %v553 = vsel %vm421, %v507, 0
    %v556 = vsel %vm421, %v509, 0
    %558 = vmatprep.subr.mxu0 0.0
    %559 = vmatpush1.msra.mxu0 %v511
    %560 = vmatprep.subr.mxu0 0.0
    %561 = vmatpush1.msra.mxu0 %v513
    %562 = vmatprep.subr.mxu0 0.0
    %563 = vmatpush1.msra.mxu0 %v515
    %564 = vmatprep.subr.mxu0 0.0
    %565 = vmatpush1.msra.mxu0 %v517
    %566 = vmatprep.subr.mxu0 0.0
    %567 = vmatpush1.msra.mxu0 %v519
    %568 = vmatprep.subr.mxu0 0.0
    %569 = vmatpush1.msra.mxu0 %v521
    %570 = vmatprep.subr.mxu0 0.0
    %571 = vmatpush1.msra.mxu0 %v523
    %572 = vmatprep.subr.mxu0 0.0
    %573 = vmatpush1.msra.mxu0 %v525
    %574 = vmatprep.subr.mxu0 0.0
    %575 = vmatpush1.msra.mxu0 0.0
    %576 = vmatprep.subr.mxu0 0.0
    %577 = vmatpush1.msra.mxu0 0.0
    %578 = vmatprep.subr.mxu0 0.0
    %579 = vmatpush1.msra.mxu0 0.0
    %580 = vmatprep.subr.mxu0 0.0
    %581 = vmatpush1.msra.mxu0 0.0
    %582 = vmatprep.subr.mxu0 0.0
    %583 = vmatpush1.msra.mxu0 0.0
    %584 = vmatprep.subr.mxu0 0.0
    %585 = vmatpush1.msra.mxu0 0.0
    %586 = vmatprep.subr.mxu0 0.0
    %587 = vmatpush1.msra.mxu0 0.0
    %588 = vmatprep.subr.mxu0 0.0
    %589 = vmatpush1.msra.mxu0 0.0
    %590 = vmatprep.subr.mxu0 0.0
    %591 = vmatpush1.msra.mxu0 0.0
    %592 = vmatprep.subr.mxu0 0.0
    %593 = vmatpush1.msra.mxu0 0.0
    %594 = vmatprep.subr.mxu0 0.0
    %595 = vmatpush1.msra.mxu0 0.0
    %596 = vmatprep.subr.mxu0 0.0
    %597 = vmatpush1.msra.mxu0 0.0
    %598 = vmatprep.subr.mxu0 0.0
    %599 = vmatpush1.msra.mxu0 0.0
    %600 = vmatprep.subr.mxu0 0.0
    %601 = vmatpush1.msra.mxu0 0.0
    %602 = vmatprep.subr.mxu0 0.0
    %603 = vmatpush1.msra.mxu0 0.0
    %604 = vmatprep.subr.mxu0 0.0
    %605 = vmatpush1.msra.mxu0 0.0
    %606 = vmatprep.subr.mxu0 0.0
    %607 = vmatpush1.msra.mxu0 0.0
    %608 = vmatprep.subr.mxu0 0.0
    %609 = vmatpush1.msra.mxu0 0.0
    %610 = vmatprep.subr.mxu0 0.0
    %611 = vmatpush1.msra.mxu0 0.0
    %612 = vmatprep.subr.mxu0 0.0
    %613 = vmatpush1.msra.mxu0 0.0
    %614 = vmatprep.subr.mxu0 0.0
    %615 = vmatpush1.msra.mxu0 0.0
    %616 = vmatprep.subr.mxu0 0.0
    %617 = vmatpush1.msra.mxu0 0.0
    %618 = vmatprep.subr.mxu0 0.0
    %619 = vmatpush1.msra.mxu0 0.0
    %620 = vmatprep.subr.mxu0 0.0
    %621 = vmatpush1.msra.mxu0 0.0
    %622 = vmatprep.mubr.f32.mxu0 0.0
    %623 = vmatmul.mubr.f32.gmra.mrb[0].mxu0 %v535
    %v624 = vpop.f32.mrb[0].mxu0
    %v625 = vadd.f32 0.0, %v624
    %v626 = vpop.f32.mrb[0].mxu0
    %627 = vmatprep.mubr.f32.mxu0 0.0
    %628 = vmatmul.mubr.f32.gmra.mrb[0].mxu0 %v538
    %v629 = vpop.f32.mrb[0].mxu0
    %v630 = vadd.f32 0.0, %v629
    %v631 = vpop.f32.mrb[0].mxu0
    %632 = vmatprep.mubr.f32.mxu0 0.0
    %633 = vmatmul.mubr.f32.gmra.mrb[0].mxu0 %v541
    %v634 = vpop.f32.mrb[0].mxu0
    %v635 = vadd.f32 0.0, %v634
    %v636 = vpop.f32.mrb[0].mxu0
    %637 = vmatprep.mubr.f32.mxu0 0.0
    %638 = vmatmul.mubr.f32.gmra.mrb[0].mxu0 %v544
    %v639 = vpop.f32.mrb[0].mxu0
    %v640 = vadd.f32 0.0, %v639
    %v641 = vpop.f32.mrb[0].mxu0
    %642 = vmatprep.mubr.f32.mxu0 0.0
    %643 = vmatmul.mubr.f32.gmra.mrb[0].mxu0 %v547
    %v644 = vpop.f32.mrb[0].mxu0
    %v645 = vadd.f32 0.0, %v644
    %v646 = vpop.f32.mrb[0].mxu0
    %647 = vmatprep.mubr.f32.mxu0 0.0
    %648 = vmatmul.mubr.f32.gmra.mrb[0].mxu0 %v550
    %v649 = vpop.f32.mrb[0].mxu0
    %v650 = vadd.f32 0.0, %v649
    %v651 = vpop.f32.mrb[0].mxu0
    %652 = vmatprep.mubr.f32.mxu0 0.0
    %653 = vmatmul.mubr.f32.gmra.mrb[0].mxu0 %v553
    %v654 = vpop.f32.mrb[0].mxu0
    %v655 = vadd.f32 0.0, %v654
    %v656 = vpop.f32.mrb[0].mxu0
    %657 = vmatprep.mubr.f32.mxu0 0.0
    %658 = vmatmul.mubr.f32.gmra.mrb[0].mxu0 %v556
    %v659 = vpop.f32.mrb[0].mxu0
    %v660 = vadd.f32 0.0, %v659
    %v661 = vpop.f32.mrb[0].mxu0
    %662 = vdwg.mxu0
    %665 = vrot.lane.b32.xlu0 %v635, 8
    %v666 = vpop.permute.xlu0 %665
    %667 = vrot.lane.b32.xlu0 %v640, 8
    %v668 = vpop.permute.xlu0 %667
    %673 = vrot.lane.b32.xlu0 %v645, 16
    %v674 = vpop.permute.xlu0 %673
    %675 = vrot.lane.b32.xlu0 %v650, 16
    %v676 = vpop.permute.xlu0 %675
    %681 = vrot.lane.b32.xlu0 %v655, 24
    %v682 = vpop.permute.xlu0 %681
    %683 = vrot.lane.b32.xlu0 %v660, 24
    %v684 = vpop.permute.xlu0 %683
    %v687 = vsel %vm267, %v625, %v666
    %v688 = vsel %vm267, %v630, %v668
    %vm689 = vcmask 130048
    %v690 = vsel %vm689, %v687, %v674
    %v691 = vsel %vm689, %v688, %v676
    %vm692 = vcmask 195584
    %v693 = vsel %vm692, %v690, %v682
    %v694 = vsel %vm692, %v691, %v684
    %v695 = vld [vmem:[%s5] sm:$0xff]
    %v696 = vld [vmem:[%s5 + $0x8] sm:$0xff]
    %v697 = vld [vmem:[%s5 + $0x10] sm:$0xff]
    %v698 = vld [vmem:[%s5 + $0x18] sm:$0xff]
    %v699 = vld [vmem:[%s6] sm:$0x1]
    %v701 = vlaneseq
    %v702 = vshrl.u32 %v701, 7
    %v703 = vsub.s32 0, %v702
    %v704 = vrot.slane %v699, %v703
    %v707 = vsel %vm49, %v693, 0
    %v710 = vsel %vm49, %v694, 0
    %712 = vmatprep.subr.mxu0 0.0
    %713 = vmatpush1.msra.mxu0 %v695
    %714 = vmatprep.subr.mxu0 0.0
    %715 = vmatpush1.msra.mxu0 %v696
    %716 = vmatprep.subr.mxu0 0.0
    %717 = vmatpush1.msra.mxu0 %v697
    %718 = vmatprep.subr.mxu0 0.0
    %719 = vmatpush1.msra.mxu0 %v698
    %720 = vmatprep.subr.mxu0 0.0
    %721 = vmatpush1.msra.mxu0 0.0
    %722 = vmatprep.subr.mxu0 0.0
    %723 = vmatpush1.msra.mxu0 0.0
    %724 = vmatprep.subr.mxu0 0.0
    %725 = vmatpush1.msra.mxu0 0.0
    %726 = vmatprep.subr.mxu0 0.0
    %727 = vmatpush1.msra.mxu0 0.0
    %728 = vmatprep.subr.mxu0 0.0
    %729 = vmatpush1.msra.mxu0 0.0
    %730 = vmatprep.subr.mxu0 0.0
    %731 = vmatpush1.msra.mxu0 0.0
    %732 = vmatprep.subr.mxu0 0.0
    %733 = vmatpush1.msra.mxu0 0.0
    %734 = vmatprep.subr.mxu0 0.0
    %735 = vmatpush1.msra.mxu0 0.0
    %736 = vmatprep.subr.mxu0 0.0
    %737 = vmatpush1.msra.mxu0 0.0
    %738 = vmatprep.subr.mxu0 0.0
    %739 = vmatpush1.msra.mxu0 0.0
    %740 = vmatprep.subr.mxu0 0.0
    %741 = vmatpush1.msra.mxu0 0.0
    %742 = vmatprep.subr.mxu0 0.0
    %743 = vmatpush1.msra.mxu0 0.0
    %744 = vmatprep.subr.mxu0 0.0
    %745 = vmatpush1.msra.mxu0 0.0
    %746 = vmatprep.subr.mxu0 0.0
    %747 = vmatpush1.msra.mxu0 0.0
    %748 = vmatprep.subr.mxu0 0.0
    %749 = vmatpush1.msra.mxu0 0.0
    %750 = vmatprep.subr.mxu0 0.0
    %751 = vmatpush1.msra.mxu0 0.0
    %752 = vmatprep.subr.mxu0 0.0
    %753 = vmatpush1.msra.mxu0 0.0
    %754 = vmatprep.subr.mxu0 0.0
    %755 = vmatpush1.msra.mxu0 0.0
    %756 = vmatprep.subr.mxu0 0.0
    %757 = vmatpush1.msra.mxu0 0.0
    %758 = vmatprep.subr.mxu0 0.0
    %759 = vmatpush1.msra.mxu0 0.0
    %760 = vmatprep.subr.mxu0 0.0
    %761 = vmatpush1.msra.mxu0 0.0
    %762 = vmatprep.subr.mxu0 0.0
    %763 = vmatpush1.msra.mxu0 0.0
    %764 = vmatprep.subr.mxu0 0.0
    %765 = vmatpush1.msra.mxu0 0.0
    %766 = vmatprep.subr.mxu0 0.0
    %767 = vmatpush1.msra.mxu0 0.0
    %768 = vmatprep.subr.mxu0 0.0
    %769 = vmatpush1.msra.mxu0 0.0
    %770 = vmatprep.subr.mxu0 0.0
    %771 = vmatpush1.msra.mxu0 0.0
    %772 = vmatprep.subr.mxu0 0.0
    %773 = vmatpush1.msra.mxu0 0.0
    %774 = vmatprep.subr.mxu0 0.0
    %775 = vmatpush1.msra.mxu0 0.0
    %776 = vmatprep.mubr.f32.mxu0 0.0
    %777 = vmatmul.mubr.f32.gmra.mrb[0].mxu0 %v707
    %v778 = vpop.f32.mrb[0].mxu0
    %v779 = vadd.f32 %v704, %v778
    %v780 = vpop.f32.mrb[0].mxu0
    %781 = vmatprep.mubr.f32.mxu0 0.0
    %782 = vmatmul.mubr.f32.gmra.mrb[0].mxu0 %v710
    %v783 = vpop.f32.mrb[0].mxu0
    %v784 = vadd.f32 %v704, %v783
    %v785 = vpop.f32.mrb[0].mxu0
    %786 = vdwg.mxu0
    %v787 = vadd.f32 %v45, %v779
    %v788 = vadd.f32 %v46, %v784
    %v789 = vld [vmem:[%s7] sm:$0x1]
    %v790 = vld [vmem:[%s8] sm:$0x1]
    %v791 = vsel %vm49, %v787, 0.0
    %792 = vadd.xlane.f32.xlu0 %v791
    %v793 = vpop.xlane.xlu0 %792
    %v794 = vsel %vm49, %v788, 0.0
    %795 = vadd.xlane.f32.xlu0 %v794
    %v796 = vpop.xlane.xlu0 %795
    %v797 = vmul.f32 %v793, %v56
    %v798 = vmul.f32 %v796, %v56
    %v799 = vsub.f32 %v787, %v797
    %v800 = vsub.f32 %v788, %v798
    %v801 = vmul.f32 %v799, %v799
    %v802 = vmul.f32 %v800, %v800
    %v803 = vsel %vm49, %v801, 0.0
    %804 = vadd.xlane.f32.xlu0 %v803
    %v805 = vpop.xlane.xlu0 %804
    %v806 = vsel %vm49, %v802, 0.0
    %807 = vadd.xlane.f32.xlu0 %v806
    %v808 = vpop.xlane.xlu0 %807
    %v809 = vmul.f32 %v805, %v56
    %v810 = vmul.f32 %v808, %v56
    %v811 = vadd.f32 %v809, 1e-05
    %v812 = vadd.f32 %v810, 1e-05
    %v813 = vrsqrt.pop %v811
    %v814 = vrsqrt.pop %v812
    %v815 = vmul.f32 %v799, %v813
    %v816 = vmul.f32 %v800, %v814
    %v818 = vlaneseq
    %v819 = vshrl.u32 %v818, 7
    %v820 = vsub.s32 0, %v819
    %v821 = vrot.slane %v789, %v820
    %v823 = vmul.f32 %v815, %v821
    %v824 = vmul.f32 %v816, %v821
    %v826 = vlaneseq
    %v827 = vshrl.u32 %v826, 7
    %v828 = vsub.s32 0, %v827
    %v829 = vrot.slane %v790, %v828
    %v831 = vadd.f32 %v823, %v829
    %v832 = vadd.f32 %v824, %v829
    %v833 = vld [vmem:[%s9] sm:$0xff]
    %v834 = vld [vmem:[%s9 + $0x8] sm:$0xff]
    %v835 = vld [vmem:[%s9 + $0x10] sm:$0xff]
    %v836 = vld [vmem:[%s9 + $0x18] sm:$0xff]
    %v837 = vld [vmem:[%s10] sm:$0x1]
    %v839 = vlaneseq
    %v840 = vshrl.u32 %v839, 7
    %v841 = vsub.s32 0, %v840
    %v842 = vrot.slane %v837, %v841
    %v845 = vsel %vm49, %v831, 0
    %v848 = vsel %vm49, %v832, 0
    %850 = vmatprep.subr.mxu0 0.0
    %851 = vmatpush1.msra.mxu0 %v833
    %852 = vmatprep.subr.mxu0 0.0
    %853 = vmatpush1.msra.mxu0 %v834
    %854 = vmatprep.subr.mxu0 0.0
    %855 = vmatpush1.msra.mxu0 %v835
    %856 = vmatprep.subr.mxu0 0.0
    %857 = vmatpush1.msra.mxu0 %v836
    %858 = vmatprep.subr.mxu0 0.0
    %859 = vmatpush1.msra.mxu0 0.0
    %860 = vmatprep.subr.mxu0 0.0
    %861 = vmatpush1.msra.mxu0 0.0
    %862 = vmatprep.subr.mxu0 0.0
    %863 = vmatpush1.msra.mxu0 0.0
    %864 = vmatprep.subr.mxu0 0.0
    %865 = vmatpush1.msra.mxu0 0.0
    %866 = vmatprep.subr.mxu0 0.0
    %867 = vmatpush1.msra.mxu0 0.0
    %868 = vmatprep.subr.mxu0 0.0
    %869 = vmatpush1.msra.mxu0 0.0
    %870 = vmatprep.subr.mxu0 0.0
    %871 = vmatpush1.msra.mxu0 0.0
    %872 = vmatprep.subr.mxu0 0.0
    %873 = vmatpush1.msra.mxu0 0.0
    %874 = vmatprep.subr.mxu0 0.0
    %875 = vmatpush1.msra.mxu0 0.0
    %876 = vmatprep.subr.mxu0 0.0
    %877 = vmatpush1.msra.mxu0 0.0
    %878 = vmatprep.subr.mxu0 0.0
    %879 = vmatpush1.msra.mxu0 0.0
    %880 = vmatprep.subr.mxu0 0.0
    %881 = vmatpush1.msra.mxu0 0.0
    %882 = vmatprep.subr.mxu0 0.0
    %883 = vmatpush1.msra.mxu0 0.0
    %884 = vmatprep.subr.mxu0 0.0
    %885 = vmatpush1.msra.mxu0 0.0
    %886 = vmatprep.subr.mxu0 0.0
    %887 = vmatpush1.msra.mxu0 0.0
    %888 = vmatprep.subr.mxu0 0.0
    %889 = vmatpush1.msra.mxu0 0.0
    %890 = vmatprep.subr.mxu0 0.0
    %891 = vmatpush1.msra.mxu0 0.0
    %892 = vmatprep.subr.mxu0 0.0
    %893 = vmatpush1.msra.mxu0 0.0
    %894 = vmatprep.subr.mxu0 0.0
    %895 = vmatpush1.msra.mxu0 0.0
    %896 = vmatprep.subr.mxu0 0.0
    %897 = vmatpush1.msra.mxu0 0.0
    %898 = vmatprep.subr.mxu0 0.0
    %899 = vmatpush1.msra.mxu0 0.0
    %900 = vmatprep.subr.mxu0 0.0
    %901 = vmatpush1.msra.mxu0 0.0
    %902 = vmatprep.subr.mxu0 0.0
    %903 = vmatpush1.msra.mxu0 0.0
    %904 = vmatprep.subr.mxu0 0.0
    %905 = vmatpush1.msra.mxu0 0.0
    %906 = vmatprep.subr.mxu0 0.0
    %907 = vmatpush1.msra.mxu0 0.0
    %908 = vmatprep.subr.mxu0 0.0
    %909 = vmatpush1.msra.mxu0 0.0
    %910 = vmatprep.subr.mxu0 0.0
    %911 = vmatpush1.msra.mxu0 0.0
    %912 = vmatprep.subr.mxu0 0.0
    %913 = vmatpush1.msra.mxu0 0.0
    %914 = vmatprep.mubr.f32.mxu0 0.0
    %915 = vmatmul.mubr.f32.gmra.mrb[0].mxu0 %v845
    %v916 = vpop.f32.mrb[0].mxu0
    %v917 = vadd.f32 %v842, %v916
    %v918 = vpop.f32.mrb[0].mxu0
    %919 = vmatprep.mubr.f32.mxu0 0.0
    %920 = vmatmul.mubr.f32.gmra.mrb[0].mxu0 %v848
    %v921 = vpop.f32.mrb[0].mxu0
    %v922 = vadd.f32 %v842, %v921
    %v923 = vpop.f32.mrb[0].mxu0
    %924 = vdwg.mxu0
    %v925 = vmul.f32 %v917, 0.5
    %v926 = vmul.f32 %v922, 0.5
    %v927 = vmul.f32 %v917, 0.044715
    %v928 = vmul.f32 %v922, 0.044715
    %v929 = vmul.f32 %v927, %v917
    %v930 = vmul.f32 %v928, %v922
    %v931 = vmul.f32 %v929, %v917
    %v932 = vmul.f32 %v930, %v922
    %v933 = vadd.f32 %v917, %v931
    %v934 = vadd.f32 %v922, %v932
    %v935 = vmul.f32 %v933, 0.7978846
    %v936 = vmul.f32 %v934, 0.7978846
    %v937 = vtanh.pop %v935
    %v938 = vtanh.pop %v936
    %v939 = vadd.f32 %v937, 1.0
    %v940 = vadd.f32 %v938, 1.0
    %v941 = vmul.f32 %v925, %v939
    %v942 = vmul.f32 %v926, %v940
    %v943 = vld [vmem:[%s11] sm:$0xff]
    %v944 = vld [vmem:[%s11 + $0x8] sm:$0xff]
    %v945 = vld [vmem:[%s11 + $0x10] sm:$0xff]
    %v946 = vld [vmem:[%s11 + $0x18] sm:$0xff]
    %v947 = vld [vmem:[%s11 + $0x20] sm:$0xff]
    %v948 = vld [vmem:[%s11 + $0x28] sm:$0xff]
    %v949 = vld [vmem:[%s11 + $0x30] sm:$0xff]
    %v950 = vld [vmem:[%s11 + $0x38] sm:$0xff]
    %v951 = vld [vmem:[%s11 + $0x40] sm:$0xff]
    %v952 = vld [vmem:[%s11 + $0x48] sm:$0xff]
    %v953 = vld [vmem:[%s11 + $0x50] sm:$0xff]
    %v954 = vld [vmem:[%s11 + $0x58] sm:$0xff]
    %v955 = vld [vmem:[%s11 + $0x60] sm:$0xff]
    %v956 = vld [vmem:[%s11 + $0x68] sm:$0xff]
    %v957 = vld [vmem:[%s11 + $0x70] sm:$0xff]
    %v958 = vld [vmem:[%s11 + $0x78] sm:$0xff]
    %v959 = vld [vmem:[%s12] sm:$0x1]
    %v961 = vlaneseq
    %v962 = vshrl.u32 %v961, 7
    %v963 = vsub.s32 0, %v962
    %v964 = vrot.slane %v959, %v963
    %966 = vmatprep.subr.mxu0 0.0
    %967 = vmatpush1.msra.mxu0 %v943
    %968 = vmatprep.subr.mxu0 0.0
    %969 = vmatpush1.msra.mxu0 %v944
    %970 = vmatprep.subr.mxu0 0.0
    %971 = vmatpush1.msra.mxu0 %v945
    %972 = vmatprep.subr.mxu0 0.0
    %973 = vmatpush1.msra.mxu0 %v946
    %974 = vmatprep.subr.mxu0 0.0
    %975 = vmatpush1.msra.mxu0 %v947
    %976 = vmatprep.subr.mxu0 0.0
    %977 = vmatpush1.msra.mxu0 %v948
    %978 = vmatprep.subr.mxu0 0.0
    %979 = vmatpush1.msra.mxu0 %v949
    %980 = vmatprep.subr.mxu0 0.0
    %981 = vmatpush1.msra.mxu0 %v950
    %982 = vmatprep.subr.mxu0 0.0
    %983 = vmatpush1.msra.mxu0 %v951
    %984 = vmatprep.subr.mxu0 0.0
    %985 = vmatpush1.msra.mxu0 %v952
    %986 = vmatprep.subr.mxu0 0.0
    %987 = vmatpush1.msra.mxu0 %v953
    %988 = vmatprep.subr.mxu0 0.0
    %989 = vmatpush1.msra.mxu0 %v954
    %990 = vmatprep.subr.mxu0 0.0
    %991 = vmatpush1.msra.mxu0 %v955
    %992 = vmatprep.subr.mxu0 0.0
    %993 = vmatpush1.msra.mxu0 %v956
    %994 = vmatprep.subr.mxu0 0.0
    %995 = vmatpush1.msra.mxu0 %v957
    %996 = vmatprep.subr.mxu0 0.0
    %997 = vmatpush1.msra.mxu0 %v958
    %998 = vmatprep.subr.mxu0 0.0
    %999 = vmatpush1.msra.mxu0 0.0
    %1000 = vmatprep.subr.mxu0 0.0
    %1001 = vmatpush1.msra.mxu0 0.0
    %1002 = vmatprep.subr.mxu0 0.0
    %1003 = vmatpush1.msra.mxu0 0.0
    %1004 = vmatprep.subr.mxu0 0.0
    %1005 = vmatpush1.msra.mxu0 0.0
    %1006 = vmatprep.subr.mxu0 0.0
    %1007 = vmatpush1.msra.mxu0 0.0
    %1008 = vmatprep.subr.mxu0 0.0
    %1009 = vmatpush1.msra.mxu0 0.0
    %1010 = vmatprep.subr.mxu0 0.0
    %1011 = vmatpush1.msra.mxu0 0.0
    %1012 = vmatprep.subr.mxu0 0.0
    %1013 = vmatpush1.msra.mxu0 0.0
    %1014 = vmatprep.subr.mxu0 0.0
    %1015 = vmatpush1.msra.mxu0 0.0
    %1016 = vmatprep.subr.mxu0 0.0
    %1017 = vmatpush1.msra.mxu0 0.0
    %1018 = vmatprep.subr.mxu0 0.0
    %1019 = vmatpush1.msra.mxu0 0.0
    %1020 = vmatprep.subr.mxu0 0.0
    %1021 = vmatpush1.msra.mxu0 0.0
    %1022 = vmatprep.subr.mxu0 0.0
    %1023 = vmatpush1.msra.mxu0 0.0
    %1024 = vmatprep.subr.mxu0 0.0
    %1025 = vmatpush1.msra.mxu0 0.0
    %1026 = vmatprep.subr.mxu0 0.0
    %1027 = vmatpush1.msra.mxu0 0.0
    %1028 = vmatprep.subr.mxu0 0.0
    %1029 = vmatpush1.msra.mxu0 0.0
    %1030 = vmatprep.mubr.f32.mxu0 0.0
    %1031 = vmatmul.mubr.f32.gmra.mrb[0].mxu0 %v941
    %v1032 = vpop.f32.mrb[0].mxu0
    %v1033 = vadd.f32 %v964, %v1032
    %v1034 = vpop.f32.mrb[0].mxu0
    %1035 = vmatprep.mubr.f32.mxu0 0.0
    %1036 = vmatmul.mubr.f32.gmra.mrb[0].mxu0 %v942
    %v1037 = vpop.f32.mrb[0].mxu0
    %v1038 = vadd.f32 %v964, %v1037
    %v1039 = vpop.f32.mrb[0].mxu0
    %1040 = vdwg.mxu0
    %v1041 = vadd.f32 %v787, %v1033
    %v1042 = vadd.f32 %v788, %v1038
    %1043 = vst.msk [vmem:[#allocation2] sm:$0xff] %vm49, %v1041
    %1044 = vst.msk [vmem:[#allocation2 + $0x8] sm:$0xff] %vm49, %v1042
    // Predicated region
    $region54: #{tpu_custom_call.1} parent=1 // pred_check
      _
    $region55: #{tpu_custom_call.1} parent=1 // pred_check_branch
      %1046 = sbr.rel (0) target = $region57
    $region56: #{tpu_custom_call.1} parent=1 // pred_region
      %s1048 = ssub.s32 256, 256
      %1049 = vsyncadd [#allocation3], %s1048
      %s1050 = sshll.u32 [#allocation2], 4
      %s1051 = int_to_ptr.vmem [resolvable:$true] %s1050
      %1056 = dma.vmem_to_hbm [thread:$0]  %s1051, 256, %s13, [#allocation3], 128, 128, 8
    $region57: #{tpu_custom_call.1} parent=1 // pred_fallthru
      _
    // Predicated region
    $region58: #{tpu_custom_call.1} parent=1 // pred_check
      _
    $region59: #{tpu_custom_call.1} parent=1 // pred_check_branch
      %1058 = sbr.rel (0) target = $region61
    $region60: #{tpu_custom_call.1} parent=1 // pred_region
      %1059 = dma.done [#allocation3], 256
    $region61: #{tpu_custom_call.1} parent=1 // pred_fallthru
      _
    %1060 = vsyncpa [#allocation3], 1

</llo_original>
